<compile_context>
chip_gen: v7x
topology: tpu7x:2x2x1
jax: 0.10.0
libtpu: 0.0.40
codegen_flags: <defaults>
</compile_context>

<pallas_src>
import functools
import math

import jax
import jax.numpy as jnp
from jax.experimental import pallas as pl
from jax.experimental.pallas import tpu as pltpu


# ---------------------------------------------------------------------------
# Kernel: one streamed (TR, C) row-block of activations times a per-row f32
# scale column.  Multiply in f32, cast on store.
# ---------------------------------------------------------------------------
def _drop_path_kernel(x_ref, s_ref, o_ref):
    # x_ref: (TR, C) activations; s_ref: (TR, 1) f32 per-row scale.
    o_ref[...] = (x_ref[...] * s_ref[...]).astype(o_ref.dtype)


@functools.lru_cache(maxsize=None)
def _vmem_capacity_bytes():
    try:
        return int(pltpu.get_tpu_info().vmem_capacity_bytes)
    except Exception:
        return 64 * 1024 * 1024  # conservative fallback (v7x has the smallest VMEM)


def _choose_lane_width(F):
    """Lane-dense row width: largest of {1024,512,256,128} dividing F, else 128
    (the wrapper then pads the per-sample feature dim up to a multiple of 128)."""
    for c in (1024, 512, 256, 128):
        if F % c == 0:
            return c
    return 128


def _pick_row_tile(total_rows, C, itemsize):
    """Rows per block: target ~4 MiB x-blocks, capped by the generation's VMEM
    so in + out double-buffering (plus the small scale stream) stays safe."""
    block_budget = min(4 * 1024 * 1024, _vmem_capacity_bytes() // 16)
    rows_fit = max(1, block_budget // (C * itemsize))
    if rows_fit >= total_rows:
        return total_rows                # whole slab is one (still small) block
    return max(8, (rows_fit // 8) * 8)   # multiple of 8 -> full sublane occupancy


def _apply_scale(x_rows, scale_rows):
    """x_rows: (rows, C) activations, scale_rows: (rows, 1) f32 multiplier."""
    rows, C = x_rows.shape
    itemsize = jnp.dtype(x_rows.dtype).itemsize
    tr = _pick_row_tile(rows, C, itemsize)
    grid = (pl.cdiv(rows, tr),)          # ragged tail block handled by Pallas
    vmem_limit = min(_vmem_capacity_bytes() * 3 // 4, 32 * 1024 * 1024)
    return pl.pallas_call(
        _drop_path_kernel,
        out_shape=jax.ShapeDtypeStruct((rows, C), x_rows.dtype),
        grid=grid,
        in_specs=[
            pl.BlockSpec((tr, C), lambda i: (i, 0)),  # activations, streamed
            pl.BlockSpec((tr, 1), lambda i: (i, 0)),  # per-row scale, streamed (tiny)
        ],
        out_specs=pl.BlockSpec((tr, C), lambda i: (i, 0)),
        compiler_params=pltpu.CompilerParams(
            dimension_semantics=("parallel",),  # row axis shards across TCs on v7x
            vmem_limit_bytes=vmem_limit,
        ),
        # NOTE: pass input_output_aliases={0: 0} here if the caller donates x
        # (halves HBM footprint; bytes moved are unchanged).
    )(x_rows, scale_rows)


@functools.partial(jax.jit, static_argnames=("drop_prob",))
def _drop_path_train(x, key, *, drop_prob):
    keep_prob = 1.0 - drop_prob
    B = x.shape[0]
    F = int(math.prod(x.shape[1:])) if x.ndim > 1 else 1

    # Per-sample keep/scale in {0, 1/keep_prob}, computed in f32:
    # floor(keep_prob + U[0,1)) / keep_prob  (matches the torch reference).
    u = jax.random.uniform(key, (B,), dtype=jnp.float32)
    scale = jnp.floor(keep_prob + u) / keep_prob            # (B,) f32

    # Re-layout to a lane-dense (rows, C) slab; block size independent of B.
    C = _choose_lane_width(F)
    F_pad = ((F + C - 1) // C) * C
    x2 = x.reshape(B, F)
    if F_pad != F:
        # Rare ragged case (F not a multiple of 128): one extra padded pass.
        x2 = jnp.pad(x2, ((0, 0), (0, F_pad - F)))
    R = F_pad // C
    rows = B * R
    x_rows = x2.reshape(rows, C)                            # metadata-only reshape
    scale_rows = jnp.repeat(scale, R, total_repeat_length=rows).reshape(rows, 1)

    out_rows = _apply_scale(x_rows, scale_rows)

    out = out_rows.reshape(B, F_pad)
    if F_pad != F:
        out = out[:, :F]
    return out.reshape(x.shape)


def drop_path(x, drop_prob: float = 0.0, training: bool = False, key=None):
    """Forward pass of DropPath. Identity when not training or drop_prob == 0."""
    if drop_prob == 0.0 or not training:
        return x
    if key is None:
        raise ValueError("drop_path in training mode requires a PRNG key")
    return _drop_path_train(x, key, drop_prob=float(drop_prob))


class DropPath:
    """Module-style wrapper mirroring the PyTorch nn.Module."""

    def __init__(self, drop_prob=None):
        self.drop_prob = 0.0 if drop_prob is None else float(drop_prob)
        self.training = True

    def __call__(self, x, key=None):
        return drop_path(x, self.drop_prob, self.training, key=key)


if __name__ == "__main__":
    key = jax.random.PRNGKey(0)
    kx, kdrop, kx2 = jax.random.split(key, 3)

    # Transformer-discriminator style activations: (batch, seq, hidden).
    B, N, D = 2, 8, 32
    drop_prob = 0.25
    keep_prob = 1.0 - drop_prob

    x = jax.random.normal(kx, (B, N, D), dtype=jnp.float32)

    # --- training path (kernel exercised) ---
    y = drop_path(x, drop_prob, training=True, key=kdrop)
    jax.block_until_ready(y)

    # Reference: identical Bernoulli draw + broadcasted f32 multiply.
    u = jax.random.uniform(kdrop, (B,), dtype=jnp.float32)
    scale_ref = (jnp.floor(keep_prob + u) / keep_prob).reshape(B, 1, 1)
    y_ref = x * scale_ref
    assert y.shape == x.shape
    assert jnp.allclose(y, y_ref, atol=0.0, rtol=0.0), "f32 mismatch vs reference"

    # --- bf16 path (multiply happens in f32, result cast back on store) ---
    xb = x.astype(jnp.bfloat16)
    yb = drop_path(xb, drop_prob, training=True, key=kdrop)
    jax.block_until_ready(yb)
    yb_ref = (xb.astype(jnp.float32) * scale_ref).astype(jnp.bfloat16)
    assert jnp.allclose(yb.astype(jnp.float32), yb_ref.astype(jnp.float32)), "bf16 mismatch"

    # --- ragged feature size (exercises the pad-to-128 path) ---
    xr = jax.random.normal(kx2, (B, 5, 7), dtype=jnp.float32)
    yr = drop_path(xr, drop_prob, training=True, key=kdrop)
    jax.block_until_ready(yr)
    yr_ref = xr * scale_ref
    assert jnp.allclose(yr, yr_ref, atol=0.0, rtol=0.0), "ragged-F mismatch"

    # --- eval path (identity, no kernel needed) ---
    y_eval = drop_path(x, drop_prob, training=False)
    assert jnp.array_equal(y_eval, x), "eval path must be identity"

    print("KERNEL_OK")
</pallas_src>

<mosaic_0001>
module attributes {stable_mosaic.version = 11 : i64} {
  func.func @_drop_path_kernel(%arg0: i32, %arg1: memref<2x256xf32, #tpu.memory_space<vmem>>, %arg2: memref<2x1xf32, #tpu.memory_space<vmem>>, %arg3: memref<2x256xf32, #tpu.memory_space<vmem>>) attributes {dimension_semantics = [#tpu.dimension_semantics<parallel>], iteration_bounds = array<i64: 1>, scalar_prefetch = 0 : i64, scratch_operands = 0 : i64, tpu.core_type = #tpu.core_type<tc>, window_params = [{transform_indices = @transform_0, window_bounds = array<i64: 2, 256>}, {transform_indices = @transform_1, window_bounds = array<i64: 2, 1>}, {transform_indices = @transform_2, window_bounds = array<i64: 2, 256>}]} {
    %c0 = arith.constant 0 : index
    %c0_0 = arith.constant 0 : index
    %0 = vector.load %arg1[%c0, %c0_0] : memref<2x256xf32, #tpu.memory_space<vmem>>, vector<2x256xf32>
    %c0_1 = arith.constant 0 : index
    %c0_2 = arith.constant 0 : index
    %1 = vector.load %arg2[%c0_1, %c0_2] : memref<2x1xf32, #tpu.memory_space<vmem>>, vector<2x1xf32>
    %2 = vector.broadcast %1 : vector<2x1xf32> to vector<2x256xf32>
    %3 = arith.mulf %0, %2 : vector<2x256xf32>
    %c0_3 = arith.constant 0 : index
    %c0_4 = arith.constant 0 : index
    %4 = vector.load %arg3[%c0_3, %c0_4] : memref<2x256xf32, #tpu.memory_space<vmem>>, vector<2x256xf32>
    tpu.vector_store %arg3[%c0_3, %c0_4], %3 {strides = array<i32>} : memref<2x256xf32, #tpu.memory_space<vmem>>, vector<2x256xf32>,
    return
  }
  func.func @transform_0(%arg0: i32) -> (i32, i32) {
    %c0_i32 = arith.constant 0 : i32
    %c0_i32_0 = arith.constant 0 : i32
    return %arg0, %c0_i32 : i32, i32
  }
  func.func @transform_1(%arg0: i32) -> (i32, i32) {
    %c0_i32 = arith.constant 0 : i32
    %c0_i32_0 = arith.constant 0 : i32
    return %arg0, %c0_i32 : i32, i32
  }
  func.func @transform_2(%arg0: i32) -> (i32, i32) {
    %c0_i32 = arith.constant 0 : i32
    %c0_i32_0 = arith.constant 0 : i32
    return %arg0, %c0_i32 : i32, i32
  }
}

</mosaic_0001>

<llo_original>
// kernel: _drop_path_train.1
$region0: #{_drop_path_train.1}
  #allocation0 [shape = 'u32[]', space=smem, size = 0x4, offset = 0x4, fixed_abs, tag = 'smem constant byte address 0x4 - core index']
  #allocation1 [shape = 'u32[144,128]{1,0:T(1,128)}', space=vmem, size = 0x12000, scoped, tag = 'internal scratch']
  %s0 = inlined_call_operand.vmem [shape: f32[2,256], index: 0, kind: input, shape index: {}]
  %s1 = inlined_call_operand.vmem [shape: f32[2,1], index: 1, kind: input, shape index: {}]
  %s2 = inlined_call_operand.vmem [shape: f32[2,256], index: 2, kind: output, shape index: {}]
  %s3 = sld [smem:[#allocation0]]
  $region18: #{_drop_path_train.1} parent=0
    _
  %s5 = ssub.s32 1, %s3
  %s6 = scalar_select 0, %s5, %s3
  // Predicated region
  $region2: #{_drop_path_train.1} parent=0 // pred_check
    _
  $region3: #{_drop_path_train.1} parent=0 // pred_check_branch
    %8 = sbr.rel (0) target = $region5
  $region4: #{_drop_path_train.1} parent=0 // pred_region
    _
  $region5: #{_drop_path_train.1} parent=0 // pred_fallthru
    _
  // Predicated region
  $region6: #{_drop_path_train.1} parent=0 // pred_check
    _
  $region7: #{_drop_path_train.1} parent=0 // pred_check_branch
    %10 = sbr.rel (0) target = $region9
  $region8: #{_drop_path_train.1} parent=0 // pred_region
    _
  $region9: #{_drop_path_train.1} parent=0 // pred_fallthru
    _
  %v11 = vld [vmem:[%s0] sm:$0xf]
  %v12 = vld [vmem:[%s1] sm:$0x3]
  %14 = vset.pattern.permute.xlu0 0
  %15 = vperm.xlu0 %14, %v12
  %v16 = vpop.permute.xlu0 %15
  %v18 = vunpack.c.l.s4 269488144
  %v19 = vunpack.c.0.s8 %v18
  %v20 = vlaneseq
  %v21 = vshrl.u32 %v20, 7
  %v22 = vsub.s32 %v19, %v21
  %v23 = vrot.slane %v16, %v22
  %v25 = vmul.f32 %v11, %v23
  %26 = vst [vmem:[%s2] sm:$0xf] %v25
  // Predicated region
  $region10: #{_drop_path_train.1} parent=0 // pred_check
    _
  $region11: #{_drop_path_train.1} parent=0 // pred_check_branch
    %28 = sbr.rel (0) target = $region13
  $region12: #{_drop_path_train.1} parent=0 // pred_region
    _
  $region13: #{_drop_path_train.1} parent=0 // pred_fallthru
    _
  // Predicated region
  $region14: #{_drop_path_train.1} parent=0 // pred_check
    _
  $region15: #{_drop_path_train.1} parent=0 // pred_check_branch
    %30 = sbr.rel (0) target = $region17
  $region16: #{_drop_path_train.1} parent=0 // pred_region
    _
  $region17: #{_drop_path_train.1} parent=0 // pred_fallthru
    _

</llo_original>
